<compile_context>
chip_gen: v7x
topology: tpu7x:2x2x1
jax: 0.10.0
libtpu: 0.0.40
codegen_flags: <defaults>
</compile_context>

<pallas_src>
import jax
import jax.numpy as jnp
from jax.experimental import pallas as pl
from jax.experimental.pallas import tpu as pltpu


def _round_up(x: int, m: int) -> int:
    return ((x + m - 1) // m) * m


def _make_label_proxy_kernel(num_rest_layers: int, if_softmax: bool):
    """Kernel operand order:
        (y_pred_tile, y_hat_tile, W1a, W1b, b1,
         [Wr_i, br_i] * num_rest_layers, W2, b2) -> out_tile
    Activations are batch-tiled; weights/biases are full-array VMEM residents.
    Weights are bf16 (MXU native); biases and accumulation stay f32.
    """

    def kernel(*refs):
        y_pred_ref, y_hat_ref, w1a_ref, w1b_ref, b1_ref = refs[0:5]
        rest_refs = refs[5:5 + 2 * num_rest_layers]
        w2_ref, b2_ref, out_ref = refs[5 + 2 * num_rest_layers:]

        yp = y_pred_ref[...].astype(jnp.float32)
        if if_softmax:
            # numerically stabilized softmax over the class (lane) axis,
            # exact division (exp dominates the EUP slot anyway)
            m = jnp.max(yp, axis=-1, keepdims=True)
            e = jnp.exp(yp - m)
            yp = e / jnp.sum(e, axis=-1, keepdims=True)
        yh = y_hat_ref[...].astype(jnp.float32)

        # first hidden layer: relu(cat([yp, yh], 1) @ W1 + b1)
        # == relu(yp @ W1a + yh @ W1b + b1)   (W1 pre-split in the wrapper)
        h = (jnp.dot(yp.astype(jnp.bfloat16), w1a_ref[...],
                     preferred_element_type=jnp.float32)
             + jnp.dot(yh.astype(jnp.bfloat16), w1b_ref[...],
                       preferred_element_type=jnp.float32)
             + b1_ref[...])
        h = jnp.maximum(h, 0.0)

        # extra hidden layers (num_layers - 1 of them)
        for li in range(num_rest_layers):
            wr_ref = rest_refs[2 * li]
            br_ref = rest_refs[2 * li + 1]
            h = (jnp.dot(h.astype(jnp.bfloat16), wr_ref[...],
                         preferred_element_type=jnp.float32) + br_ref[...])
            h = jnp.maximum(h, 0.0)

        # output layer (no activation)
        out = (jnp.dot(h.astype(jnp.bfloat16), w2_ref[...],
                       preferred_element_type=jnp.float32) + b2_ref[...])
        out_ref[...] = out.astype(out_ref.dtype)

    return kernel


def prepare_label_proxy_params(params, num_classes):
    """One-time layout/dtype prep (outside the hot path):
      * split W1 into W1a (softmax(y_pred) half) / W1b (y_hat half) so the
        kernel never slices a sublane-misaligned weight, fusing the concat:
        x @ W1 == sm @ W1a + y_hat @ W1b
      * cast all weight matrices to bf16 (MXU native); biases stay f32.
    """
    C = num_classes
    w1 = params["w1"]
    return {
        "w1a": w1[:C, :].astype(jnp.bfloat16),
        "w1b": w1[C:, :].astype(jnp.bfloat16),
        "b1": params["b1"].astype(jnp.float32),
        "rest": [(w.astype(jnp.bfloat16), b.astype(jnp.float32))
                 for (w, b) in params["rest"]],
        "w2": params["w2"].astype(jnp.bfloat16),
        "b2": params["b2"].astype(jnp.float32),
    }


def label_proxy_forward(y_pred, y_hat, prepped, *, if_softmax=True,
                        block_batch=1024):
    """prepped: output of prepare_label_proxy_params (bf16 weights, f32 biases,
    weights stored transposed (in_features, out_features), biases (1, out))."""
    B, C = y_pred.shape
    H = prepped["w1a"].shape[1]
    C_out = prepped["w2"].shape[1]
    num_rest = len(prepped["rest"])

    # --- batch tiling: TB multiple of 8 sublanes; NO wrapper-side padding ---
    # (the ragged last tile's out-of-range rows are simply never written back)
    TB = min(block_batch, _round_up(B, 8))
    if B > 8 and pl.cdiv(B, TB) < 2:
        # v7x megacore: give both TensorCores at least one tile when possible.
        TB = max(8, _round_up(pl.cdiv(B, 2), 8))
    grid = (pl.cdiv(B, TB),)

    kernel = _make_label_proxy_kernel(num_rest, if_softmax)

    operands = [y_pred, y_hat, prepped["w1a"], prepped["w1b"], prepped["b1"]]
    for (wr, br) in prepped["rest"]:
        operands += [wr, br]
    operands += [prepped["w2"], prepped["b2"]]

    # --- VMEM budget: bf16 resident weights (single-buffered), f32 biases,
    # double-buffered f32 I/O tiles, plus the live (TB, H) hidden activations
    # (h and the next-layer product), with 2x slack for Mosaic scratch.
    bytes_weights = (2 * (2 * C * H + num_rest * H * H + H * C_out)      # bf16 W
                     + 4 * ((1 + num_rest) * H + C_out))                 # f32 b
    bytes_tiles = 4 * 2 * (2 * TB * C + TB * C_out)                      # dbl-buf io
    bytes_live = 4 * 2 * TB * H                                          # h + prod
    budget = bytes_weights + bytes_tiles + bytes_live
    try:
        phys_vmem = int(pltpu.get_tpu_info().vmem_capacity_bytes)
    except Exception:
        phys_vmem = 64 << 20                       # conservative (v7x per-TC)
    cap = min(100 << 20, max(32 << 20, phys_vmem - (20 << 20)))
    vmem_limit = int(min(cap, max(32 << 20, 2 * budget)))

    flops = 2 * B * (2 * C * H + num_rest * H * H + H * C_out)
    bytes_accessed = 4 * (B * C * 2 + B * C_out) + bytes_weights
    cost = pl.CostEstimate(flops=int(flops),
                           transcendentals=int(B * C if if_softmax else 0),
                           bytes_accessed=int(bytes_accessed))

    def _call(weight_buffers):
        if weight_buffers is None:
            def const_spec(arr):
                # full-array block, constant index -> VMEM-resident across steps
                return pl.BlockSpec(arr.shape, lambda i: (0,) * arr.ndim)
        else:
            def const_spec(arr):
                return pl.BlockSpec(arr.shape, lambda i: (0,) * arr.ndim,
                                    pipeline_mode=pl.Buffered(weight_buffers))

        in_specs = [
            pl.BlockSpec((TB, C), lambda i: (i, 0)),   # y_pred tile
            pl.BlockSpec((TB, C), lambda i: (i, 0)),   # y_hat tile
        ] + [const_spec(a) for a in operands[2:]]
        out_specs = pl.BlockSpec((TB, C_out), lambda i: (i, 0))

        return pl.pallas_call(
            kernel,
            out_shape=jax.ShapeDtypeStruct((B, C_out), jnp.float32),
            grid=grid,
            in_specs=in_specs,
            out_specs=out_specs,
            cost_estimate=cost,
            compiler_params=pltpu.CompilerParams(
                dimension_semantics=("parallel",),
                vmem_limit_bytes=vmem_limit),
        )(*operands)

    try:
        # Constant-index weight blocks only need a single VMEM buffer.
        return _call(1)
    except Exception:
        # Fallback if this jax build rejects pipeline_mode=pl.Buffered(1).
        return _call(None)


def init_label_proxy_params(key, hidden_size, num_layers, num_classes):
    """Deterministic PyTorch-style Linear init (uniform +-1/sqrt(fan_in)).
    Weights stored transposed: (in_features, out_features); biases (1, out)."""
    def linear(k, fan_in, fan_out):
        kw, kb = jax.random.split(k)
        bound = 1.0 / jnp.sqrt(jnp.float32(fan_in))
        w = jax.random.uniform(kw, (fan_in, fan_out), jnp.float32, -bound, bound)
        b = jax.random.uniform(kb, (1, fan_out), jnp.float32, -bound, bound)
        return w, b

    keys = jax.random.split(key, num_layers + 1)
    w1, b1 = linear(keys[0], 2 * num_classes, hidden_size)
    rest = [linear(keys[1 + i], hidden_size, hidden_size)
            for i in range(num_layers - 1)]
    w2, b2 = linear(keys[num_layers], hidden_size, num_classes)
    return {"w1": w1, "b1": b1, "rest": rest, "w2": w2, "b2": b2}


def _reference_forward(y_pred, y_hat, params, if_softmax=True):
    """Pure-JAX f32 reference mirroring the PyTorch module."""
    x = jax.nn.softmax(y_pred, axis=1) if if_softmax else y_pred
    x = jnp.concatenate([x, y_hat], axis=1)
    h = jnp.maximum(x @ params["w1"] + params["b1"], 0.0)
    for (wr, br) in params["rest"]:
        h = jnp.maximum(h @ wr + br, 0.0)
    return h @ params["w2"] + params["b2"]


if __name__ == "__main__":
    # Small shapes consistent with the module's forward:
    #   y_pred: (batch, num_classes), y_hat: (batch, num_classes)
    batch = 8
    num_classes = 10
    hidden_size = 32
    num_layers = 2   # exercises one extra hidden layer in addition to the first

    key = jax.random.PRNGKey(0)
    k_params, k_pred, k_hat = jax.random.split(key, 3)

    params = init_label_proxy_params(k_params, hidden_size, num_layers,
                                     num_classes)
    prepped = prepare_label_proxy_params(params, num_classes)

    y_pred = jax.random.normal(k_pred, (batch, num_classes), jnp.float32)
    # y_hat is typically a (soft) label distribution; any float tensor works.
    y_hat = jax.nn.softmax(jax.random.normal(k_hat, (batch, num_classes),
                                             jnp.float32), axis=1)

    # if_softmax=True path
    out = label_proxy_forward(y_pred, y_hat, prepped, if_softmax=True)
    out = jax.block_until_ready(out)
    ref = _reference_forward(y_pred, y_hat, params, if_softmax=True)
    assert out.shape == (batch, num_classes)
    # bf16 MXU weights/activations vs. f32 reference -> modest tolerance.
    assert jnp.allclose(out, ref, atol=5e-2, rtol=5e-2), "mismatch (softmax)"

    # if_softmax=False path
    out_ns = label_proxy_forward(y_pred, y_hat, prepped, if_softmax=False)
    out_ns = jax.block_until_ready(out_ns)
    ref_ns = _reference_forward(y_pred, y_hat, params, if_softmax=False)
    assert jnp.allclose(out_ns, ref_ns, atol=5e-2, rtol=5e-2), \
        "mismatch (no softmax)"

    print("KERNEL_OK")
</pallas_src>

<mosaic_0001>
module attributes {stable_mosaic.version = 11 : i64} {
  func.func @kernel(%arg0: i32, %arg1: memref<8x10xf32, #tpu.memory_space<vmem>>, %arg2: memref<8x10xf32, #tpu.memory_space<vmem>>, %arg3: memref<10x32xbf16, #tpu.memory_space<vmem>>, %arg4: memref<10x32xbf16, #tpu.memory_space<vmem>>, %arg5: memref<1x32xf32, #tpu.memory_space<vmem>>, %arg6: memref<32x32xbf16, #tpu.memory_space<vmem>>, %arg7: memref<1x32xf32, #tpu.memory_space<vmem>>, %arg8: memref<32x10xbf16, #tpu.memory_space<vmem>>, %arg9: memref<1x10xf32, #tpu.memory_space<vmem>>, %arg10: memref<8x10xf32, #tpu.memory_space<vmem>>) attributes {dimension_semantics = [#tpu.dimension_semantics<parallel>], iteration_bounds = array<i64: 1>, scalar_prefetch = 0 : i64, scratch_operands = 0 : i64, tpu.core_type = #tpu.core_type<tc>, window_params = [{transform_indices = @transform_0, window_bounds = array<i64: 8, 10>}, {transform_indices = @transform_1, window_bounds = array<i64: 8, 10>}, {pipeline_mode = #tpu.pipeline_mode<synchronous>, transform_indices = @transform_2, window_bounds = array<i64: 10, 32>}, {pipeline_mode = #tpu.pipeline_mode<synchronous>, transform_indices = @transform_3, window_bounds = array<i64: 10, 32>}, {pipeline_mode = #tpu.pipeline_mode<synchronous>, transform_indices = @transform_4, window_bounds = array<i64: 1, 32>}, {pipeline_mode = #tpu.pipeline_mode<synchronous>, transform_indices = @transform_5, window_bounds = array<i64: 32, 32>}, {pipeline_mode = #tpu.pipeline_mode<synchronous>, transform_indices = @transform_6, window_bounds = array<i64: 1, 32>}, {pipeline_mode = #tpu.pipeline_mode<synchronous>, transform_indices = @transform_7, window_bounds = array<i64: 32, 10>}, {pipeline_mode = #tpu.pipeline_mode<synchronous>, transform_indices = @transform_8, window_bounds = array<i64: 1, 10>}, {transform_indices = @transform_9, window_bounds = array<i64: 8, 10>}]} {
    %c0 = arith.constant 0 : index
    %c0_0 = arith.constant 0 : index
    %0 = vector.load %arg1[%c0, %c0_0] : memref<8x10xf32, #tpu.memory_space<vmem>>, vector<8x10xf32>
    %cst = arith.constant dense<0xFF800000> : vector<8xf32>
    %1 = vector.multi_reduction <maximumf>, %0, %cst [1] : vector<8x10xf32> to vector<8xf32>
    %2 = vector.shape_cast %1 : vector<8xf32> to vector<8x1xf32>
    %3 = vector.broadcast %2 : vector<8x1xf32> to vector<8x10xf32>
    %4 = arith.subf %0, %3 : vector<8x10xf32>
    %5 = math.exp %4 : vector<8x10xf32>
    %cst_1 = arith.constant dense<0.000000e+00> : vector<8xf32>
    %6 = vector.multi_reduction <add>, %5, %cst_1 [1] : vector<8x10xf32> to vector<8xf32>
    %7 = vector.shape_cast %6 : vector<8xf32> to vector<8x1xf32>
    %8 = vector.broadcast %7 : vector<8x1xf32> to vector<8x10xf32>
    %9 = arith.divf %5, %8 : vector<8x10xf32>
    %c0_2 = arith.constant 0 : index
    %c0_3 = arith.constant 0 : index
    %10 = vector.load %arg2[%c0_2, %c0_3] : memref<8x10xf32, #tpu.memory_space<vmem>>, vector<8x10xf32>
    %11 = arith.truncf %9 : vector<8x10xf32> to vector<8x10xbf16>
    %c0_4 = arith.constant 0 : index
    %c0_5 = arith.constant 0 : index
    %12 = vector.load %arg3[%c0_4, %c0_5] : memref<10x32xbf16, #tpu.memory_space<vmem>>, vector<10x32xbf16>
    %cst_6 = arith.constant dense<0.000000e+00> : vector<8x32xf32>
    %13 = tpu.matmul %11, %12, %cst_6 {dimension_numbers = #tpu.dot_dimension_numbers<[1], [0], [0], [1], [0, 0, 1, 1], [], []>} : vector<8x10xbf16>, vector<10x32xbf16>, vector<8x32xf32> -> vector<8x32xf32>
    %14 = arith.truncf %10 : vector<8x10xf32> to vector<8x10xbf16>
    %c0_7 = arith.constant 0 : index
    %c0_8 = arith.constant 0 : index
    %15 = vector.load %arg4[%c0_7, %c0_8] : memref<10x32xbf16, #tpu.memory_space<vmem>>, vector<10x32xbf16>
    %cst_9 = arith.constant dense<0.000000e+00> : vector<8x32xf32>
    %16 = tpu.matmul %14, %15, %cst_9 {dimension_numbers = #tpu.dot_dimension_numbers<[1], [0], [0], [1], [0, 0, 1, 1], [], []>} : vector<8x10xbf16>, vector<10x32xbf16>, vector<8x32xf32> -> vector<8x32xf32>
    %17 = arith.addf %13, %16 : vector<8x32xf32>
    %c0_10 = arith.constant 0 : index
    %c0_11 = arith.constant 0 : index
    %18 = vector.load %arg5[%c0_10, %c0_11] : memref<1x32xf32, #tpu.memory_space<vmem>>, vector<1x32xf32>
    %19 = vector.broadcast %18 : vector<1x32xf32> to vector<8x32xf32>
    %20 = arith.addf %17, %19 : vector<8x32xf32>
    %cst_12 = arith.constant 0.000000e+00 : f32
    %21 = vector.broadcast %cst_12 : f32 to vector<8x32xf32>
    %22 = arith.maximumf %20, %21 : vector<8x32xf32>
    %23 = arith.truncf %22 : vector<8x32xf32> to vector<8x32xbf16>
    %c0_13 = arith.constant 0 : index
    %c0_14 = arith.constant 0 : index
    %24 = vector.load %arg6[%c0_13, %c0_14] : memref<32x32xbf16, #tpu.memory_space<vmem>>, vector<32x32xbf16>
    %cst_15 = arith.constant dense<0.000000e+00> : vector<8x32xf32>
    %25 = tpu.matmul %23, %24, %cst_15 {dimension_numbers = #tpu.dot_dimension_numbers<[1], [0], [0], [1], [0, 0, 1, 1], [], []>} : vector<8x32xbf16>, vector<32x32xbf16>, vector<8x32xf32> -> vector<8x32xf32>
    %c0_16 = arith.constant 0 : index
    %c0_17 = arith.constant 0 : index
    %26 = vector.load %arg7[%c0_16, %c0_17] : memref<1x32xf32, #tpu.memory_space<vmem>>, vector<1x32xf32>
    %27 = vector.broadcast %26 : vector<1x32xf32> to vector<8x32xf32>
    %28 = arith.addf %25, %27 : vector<8x32xf32>
    %cst_18 = arith.constant 0.000000e+00 : f32
    %29 = vector.broadcast %cst_18 : f32 to vector<8x32xf32>
    %30 = arith.maximumf %28, %29 : vector<8x32xf32>
    %31 = arith.truncf %30 : vector<8x32xf32> to vector<8x32xbf16>
    %c0_19 = arith.constant 0 : index
    %c0_20 = arith.constant 0 : index
    %32 = vector.load %arg8[%c0_19, %c0_20] : memref<32x10xbf16, #tpu.memory_space<vmem>>, vector<32x10xbf16>
    %cst_21 = arith.constant dense<0.000000e+00> : vector<8x10xf32>
    %33 = tpu.matmul %31, %32, %cst_21 {dimension_numbers = #tpu.dot_dimension_numbers<[1], [0], [0], [1], [0, 0, 1, 1], [], []>} : vector<8x32xbf16>, vector<32x10xbf16>, vector<8x10xf32> -> vector<8x10xf32>
    %c0_22 = arith.constant 0 : index
    %c0_23 = arith.constant 0 : index
    %34 = vector.load %arg9[%c0_22, %c0_23] : memref<1x10xf32, #tpu.memory_space<vmem>>, vector<1x10xf32>
    %35 = vector.broadcast %34 : vector<1x10xf32> to vector<8x10xf32>
    %36 = arith.addf %33, %35 : vector<8x10xf32>
    %c0_24 = arith.constant 0 : index
    %c0_25 = arith.constant 0 : index
    %37 = vector.load %arg10[%c0_24, %c0_25] : memref<8x10xf32, #tpu.memory_space<vmem>>, vector<8x10xf32>
    tpu.vector_store %arg10[%c0_24, %c0_25], %36 {strides = array<i32>} : memref<8x10xf32, #tpu.memory_space<vmem>>, vector<8x10xf32>,
    return
  }
  func.func @transform_0(%arg0: i32) -> (i32, i32) {
    %c0_i32 = arith.constant 0 : i32
    %c0_i32_0 = arith.constant 0 : i32
    return %arg0, %c0_i32 : i32, i32
  }
  func.func @transform_1(%arg0: i32) -> (i32, i32) {
    %c0_i32 = arith.constant 0 : i32
    %c0_i32_0 = arith.constant 0 : i32
    return %arg0, %c0_i32 : i32, i32
  }
  func.func @transform_2(%arg0: i32) -> (i32, i32) {
    %c0_i32 = arith.constant 0 : i32
    %c0_i32_0 = arith.constant 0 : i32
    %c0_i32_1 = arith.constant 0 : i32
    return %c0_i32, %c0_i32_0 : i32, i32
  }
  func.func @transform_3(%arg0: i32) -> (i32, i32) {
    %c0_i32 = arith.constant 0 : i32
    %c0_i32_0 = arith.constant 0 : i32
    %c0_i32_1 = arith.constant 0 : i32
    return %c0_i32, %c0_i32_0 : i32, i32
  }
  func.func @transform_4(%arg0: i32) -> (i32, i32) {
    %c0_i32 = arith.constant 0 : i32
    %c0_i32_0 = arith.constant 0 : i32
    %c0_i32_1 = arith.constant 0 : i32
    return %c0_i32, %c0_i32_0 : i32, i32
  }
  func.func @transform_5(%arg0: i32) -> (i32, i32) {
    %c0_i32 = arith.constant 0 : i32
    %c0_i32_0 = arith.constant 0 : i32
    %c0_i32_1 = arith.constant 0 : i32
    return %c0_i32, %c0_i32_0 : i32, i32
  }
  func.func @transform_6(%arg0: i32) -> (i32, i32) {
    %c0_i32 = arith.constant 0 : i32
    %c0_i32_0 = arith.constant 0 : i32
    %c0_i32_1 = arith.constant 0 : i32
    return %c0_i32, %c0_i32_0 : i32, i32
  }
  func.func @transform_7(%arg0: i32) -> (i32, i32) {
    %c0_i32 = arith.constant 0 : i32
    %c0_i32_0 = arith.constant 0 : i32
    %c0_i32_1 = arith.constant 0 : i32
    return %c0_i32, %c0_i32_0 : i32, i32
  }
  func.func @transform_8(%arg0: i32) -> (i32, i32) {
    %c0_i32 = arith.constant 0 : i32
    %c0_i32_0 = arith.constant 0 : i32
    %c0_i32_1 = arith.constant 0 : i32
    return %c0_i32, %c0_i32_0 : i32, i32
  }
  func.func @transform_9(%arg0: i32) -> (i32, i32) {
    %c0_i32 = arith.constant 0 : i32
    %c0_i32_0 = arith.constant 0 : i32
    return %arg0, %c0_i32 : i32, i32
  }
}

module attributes {stable_mosaic.version = 11 : i64} {
  func.func @kernel(%arg0: i32, %arg1: memref<8x10xf32, #tpu.memory_space<vmem>>, %arg2: memref<8x10xf32, #tpu.memory_space<vmem>>, %arg3: memref<10x32xbf16, #tpu.memory_space<vmem>>, %arg4: memref<10x32xbf16, #tpu.memory_space<vmem>>, %arg5: memref<1x32xf32, #tpu.memory_space<vmem>>, %arg6: memref<32x32xbf16, #tpu.memory_space<vmem>>, %arg7: memref<1x32xf32, #tpu.memory_space<vmem>>, %arg8: memref<32x10xbf16, #tpu.memory_space<vmem>>, %arg9: memref<1x10xf32, #tpu.memory_space<vmem>>, %arg10: memref<8x10xf32, #tpu.memory_space<vmem>>) attributes {dimension_semantics = [#tpu.dimension_semantics<parallel>], iteration_bounds = array<i64: 1>, scalar_prefetch = 0 : i64, scratch_operands = 0 : i64, tpu.core_type = #tpu.core_type<tc>, window_params = [{transform_indices = @transform_0, window_bounds = array<i64: 8, 10>}, {transform_indices = @transform_1, window_bounds = array<i64: 8, 10>}, {pipeline_mode = #tpu.pipeline_mode<synchronous>, transform_indices = @transform_2, window_bounds = array<i64: 10, 32>}, {pipeline_mode = #tpu.pipeline_mode<synchronous>, transform_indices = @transform_3, window_bounds = array<i64: 10, 32>}, {pipeline_mode = #tpu.pipeline_mode<synchronous>, transform_indices = @transform_4, window_bounds = array<i64: 1, 32>}, {pipeline_mode = #tpu.pipeline_mode<synchronous>, transform_indices = @transform_5, window_bounds = array<i64: 32, 32>}, {pipeline_mode = #tpu.pipeline_mode<synchronous>, transform_indices = @transform_6, window_bounds = array<i64: 1, 32>}, {pipeline_mode = #tpu.pipeline_mode<synchronous>, transform_indices = @transform_7, window_bounds = array<i64: 32, 10>}, {pipeline_mode = #tpu.pipeline_mode<synchronous>, transform_indices = @transform_8, window_bounds = array<i64: 1, 10>}, {transform_indices = @transform_9, window_bounds = array<i64: 8, 10>}]} {
    %c0 = arith.constant 0 : index
    %c0_0 = arith.constant 0 : index
    %0 = vector.load %arg1[%c0, %c0_0] : memref<8x10xf32, #tpu.memory_space<vmem>>, vector<8x10xf32>
    %cst = arith.constant dense<0xFF800000> : vector<8xf32>
    %1 = vector.multi_reduction <maximumf>, %0, %cst [1] : vector<8x10xf32> to vector<8xf32>
    %2 = vector.shape_cast %1 : vector<8xf32> to vector<8x1xf32>
    %3 = vector.broadcast %2 : vector<8x1xf32> to vector<8x10xf32>
    %4 = arith.subf %0, %3 : vector<8x10xf32>
    %5 = math.exp %4 : vector<8x10xf32>
    %cst_1 = arith.constant dense<0.000000e+00> : vector<8xf32>
    %6 = vector.multi_reduction <add>, %5, %cst_1 [1] : vector<8x10xf32> to vector<8xf32>
    %7 = vector.shape_cast %6 : vector<8xf32> to vector<8x1xf32>
    %8 = vector.broadcast %7 : vector<8x1xf32> to vector<8x10xf32>
    %9 = arith.divf %5, %8 : vector<8x10xf32>
    %c0_2 = arith.constant 0 : index
    %c0_3 = arith.constant 0 : index
    %10 = vector.load %arg2[%c0_2, %c0_3] : memref<8x10xf32, #tpu.memory_space<vmem>>, vector<8x10xf32>
    %11 = arith.truncf %9 : vector<8x10xf32> to vector<8x10xbf16>
    %c0_4 = arith.constant 0 : index
    %c0_5 = arith.constant 0 : index
    %12 = vector.load %arg3[%c0_4, %c0_5] : memref<10x32xbf16, #tpu.memory_space<vmem>>, vector<10x32xbf16>
    %cst_6 = arith.constant dense<0.000000e+00> : vector<8x32xf32>
    %13 = tpu.matmul %11, %12, %cst_6 {dimension_numbers = #tpu.dot_dimension_numbers<[1], [0], [0], [1], [0, 0, 1, 1], [], []>} : vector<8x10xbf16>, vector<10x32xbf16>, vector<8x32xf32> -> vector<8x32xf32>
    %14 = arith.truncf %10 : vector<8x10xf32> to vector<8x10xbf16>
    %c0_7 = arith.constant 0 : index
    %c0_8 = arith.constant 0 : index
    %15 = vector.load %arg4[%c0_7, %c0_8] : memref<10x32xbf16, #tpu.memory_space<vmem>>, vector<10x32xbf16>
    %cst_9 = arith.constant dense<0.000000e+00> : vector<8x32xf32>
    %16 = tpu.matmul %14, %15, %cst_9 {dimension_numbers = #tpu.dot_dimension_numbers<[1], [0], [0], [1], [0, 0, 1, 1], [], []>} : vector<8x10xbf16>, vector<10x32xbf16>, vector<8x32xf32> -> vector<8x32xf32>
    %17 = arith.addf %13, %16 : vector<8x32xf32>
    %c0_10 = arith.constant 0 : index
    %c0_11 = arith.constant 0 : index
    %18 = vector.load %arg5[%c0_10, %c0_11] : memref<1x32xf32, #tpu.memory_space<vmem>>, vector<1x32xf32>
    %19 = vector.broadcast %18 : vector<1x32xf32> to vector<8x32xf32>
    %20 = arith.addf %17, %19 : vector<8x32xf32>
    %cst_12 = arith.constant 0.000000e+00 : f32
    %21 = vector.broadcast %cst_12 : f32 to vector<8x32xf32>
    %22 = arith.maximumf %20, %21 : vector<8x32xf32>
    %23 = arith.truncf %22 : vector<8x32xf32> to vector<8x32xbf16>
    %c0_13 = arith.constant 0 : index
    %c0_14 = arith.constant 0 : index
    %24 = vector.load %arg6[%c0_13, %c0_14] : memref<32x32xbf16, #tpu.memory_space<vmem>>, vector<32x32xbf16>
    %cst_15 = arith.constant dense<0.000000e+00> : vector<8x32xf32>
    %25 = tpu.matmul %23, %24, %cst_15 {dimension_numbers = #tpu.dot_dimension_numbers<[1], [0], [0], [1], [0, 0, 1, 1], [], []>} : vector<8x32xbf16>, vector<32x32xbf16>, vector<8x32xf32> -> vector<8x32xf32>
    %c0_16 = arith.constant 0 : index
    %c0_17 = arith.constant 0 : index
    %26 = vector.load %arg7[%c0_16, %c0_17] : memref<1x32xf32, #tpu.memory_space<vmem>>, vector<1x32xf32>
    %27 = vector.broadcast %26 : vector<1x32xf32> to vector<8x32xf32>
    %28 = arith.addf %25, %27 : vector<8x32xf32>
    %cst_18 = arith.constant 0.000000e+00 : f32
    %29 = vector.broadcast %cst_18 : f32 to vector<8x32xf32>
    %30 = arith.maximumf %28, %29 : vector<8x32xf32>
    %31 = arith.truncf %30 : vector<8x32xf32> to vector<8x32xbf16>
    %c0_19 = arith.constant 0 : index
    %c0_20 = arith.constant 0 : index
    %32 = vector.load %arg8[%c0_19, %c0_20] : memref<32x10xbf16, #tpu.memory_space<vmem>>, vector<32x10xbf16>
    %cst_21 = arith.constant dense<0.000000e+00> : vector<8x10xf32>
    %33 = tpu.matmul %31, %32, %cst_21 {dimension_numbers = #tpu.dot_dimension_numbers<[1], [0], [0], [1], [0, 0, 1, 1], [], []>} : vector<8x32xbf16>, vector<32x10xbf16>, vector<8x10xf32> -> vector<8x10xf32>
    %c0_22 = arith.constant 0 : index
    %c0_23 = arith.constant 0 : index
    %34 = vector.load %arg9[%c0_22, %c0_23] : memref<1x10xf32, #tpu.memory_space<vmem>>, vector<1x10xf32>
    %35 = vector.broadcast %34 : vector<1x10xf32> to vector<8x10xf32>
    %36 = arith.addf %33, %35 : vector<8x10xf32>
    %c0_24 = arith.constant 0 : index
    %c0_25 = arith.constant 0 : index
    %37 = vector.load %arg10[%c0_24, %c0_25] : memref<8x10xf32, #tpu.memory_space<vmem>>, vector<8x10xf32>
    tpu.vector_store %arg10[%c0_24, %c0_25], %36 {strides = array<i32>} : memref<8x10xf32, #tpu.memory_space<vmem>>, vector<8x10xf32>,
    return
  }
  func.func @transform_0(%arg0: i32) -> (i32, i32) {
    %c0_i32 = arith.constant 0 : i32
    %c0_i32_0 = arith.constant 0 : i32
    return %arg0, %c0_i32 : i32, i32
  }
  func.func @transform_1(%arg0: i32) -> (i32, i32) {
    %c0_i32 = arith.constant 0 : i32
    %c0_i32_0 = arith.constant 0 : i32
    return %arg0, %c0_i32 : i32, i32
  }
  func.func @transform_2(%arg0: i32) -> (i32, i32) {
    %c0_i32 = arith.constant 0 : i32
    %c0_i32_0 = arith.constant 0 : i32
    %c0_i32_1 = arith.constant 0 : i32
    return %c0_i32, %c0_i32_0 : i32, i32
  }
  func.func @transform_3(%arg0: i32) -> (i32, i32) {
    %c0_i32 = arith.constant 0 : i32
    %c0_i32_0 = arith.constant 0 : i32
    %c0_i32_1 = arith.constant 0 : i32
    return %c0_i32, %c0_i32_0 : i32, i32
  }
  func.func @transform_4(%arg0: i32) -> (i32, i32) {
    %c0_i32 = arith.constant 0 : i32
    %c0_i32_0 = arith.constant 0 : i32
    %c0_i32_1 = arith.constant 0 : i32
    return %c0_i32, %c0_i32_0 : i32, i32
  }
  func.func @transform_5(%arg0: i32) -> (i32, i32) {
    %c0_i32 = arith.constant 0 : i32
    %c0_i32_0 = arith.constant 0 : i32
    %c0_i32_1 = arith.constant 0 : i32
    return %c0_i32, %c0_i32_0 : i32, i32
  }
  func.func @transform_6(%arg0: i32) -> (i32, i32) {
    %c0_i32 = arith.constant 0 : i32
    %c0_i32_0 = arith.constant 0 : i32
    %c0_i32_1 = arith.constant 0 : i32
    return %c0_i32, %c0_i32_0 : i32, i32
  }
  func.func @transform_7(%arg0: i32) -> (i32, i32) {
    %c0_i32 = arith.constant 0 : i32
    %c0_i32_0 = arith.constant 0 : i32
    %c0_i32_1 = arith.constant 0 : i32
    return %c0_i32, %c0_i32_0 : i32, i32
  }
  func.func @transform_8(%arg0: i32) -> (i32, i32) {
    %c0_i32 = arith.constant 0 : i32
    %c0_i32_0 = arith.constant 0 : i32
    %c0_i32_1 = arith.constant 0 : i32
    return %c0_i32, %c0_i32_0 : i32, i32
  }
  func.func @transform_9(%arg0: i32) -> (i32, i32) {
    %c0_i32 = arith.constant 0 : i32
    %c0_i32_0 = arith.constant 0 : i32
    return %arg0, %c0_i32 : i32, i32
  }
}

</mosaic_0001>

<llo_original>
// kernel: tpu_custom_call.1
$region0: #{tpu_custom_call.1}
  #allocation0 [shape = 'u32[]', space=smem, size = 0x4, offset = 0x4, fixed_abs, tag = 'smem constant byte address 0x4 - core index']
  #allocation1 [shape = 'u32[144,128]{1,0:T(1,128)}', space=vmem, size = 0x12000, scoped, tag = 'internal scratch']
  %s0 = inlined_call_operand.vmem [shape: f32[8,10], index: 0, kind: input, shape index: {}]
  %s1 = inlined_call_operand.hbm [shape: f32[8,10], index: 1, kind: input, shape index: {}]
  %s2 = inlined_call_operand.hbm [shape: bf16[10,32], index: 2, kind: input, shape index: {}]
  %s3 = inlined_call_operand.hbm [shape: bf16[10,32], index: 3, kind: input, shape index: {}]
  %s4 = inlined_call_operand.vmem [shape: f32[1,32], index: 4, kind: input, shape index: {}]
  %s5 = inlined_call_operand.vmem [shape: bf16[32,32], index: 5, kind: input, shape index: {}]
  %s6 = inlined_call_operand.vmem [shape: f32[1,32], index: 6, kind: input, shape index: {}]
  %s7 = inlined_call_operand.vmem [shape: bf16[32,10], index: 7, kind: input, shape index: {}]
  %s8 = inlined_call_operand.vmem [shape: f32[1,10], index: 8, kind: input, shape index: {}]
  %s9 = inlined_call_operand.hbm [shape: f32[8,10], index: 9, kind: output, shape index: {}]
  %s10 = sld [smem:[#allocation0]]
  $region58: #{tpu_custom_call.1} parent=0
    _
  %s12 = ssub.s32 1, %s10
  %s13 = scalar_select 0, %s12, %s10
  $region1: #{tpu_custom_call.1} parent=0
    #allocation2 [shape = 'u8[4096]{0}', space=vmem, size = 0x1000, scoped, tag = 'input window, operand 1, single buffered']
    #allocation3 [shape = 's32[1]{0}', space=sflag, size = 0x4, scoped, tag = 'scoped memory for tpu_custom_call.1']
    #allocation4 [shape = 's32[1]{0}', space=sflag, size = 0x4, scoped, tag = 'scoped memory for tpu_custom_call.1']
    #allocation5 [shape = 'u8[4096]{0}', space=vmem, size = 0x1000, scoped, tag = 'input window, operand 2, single buffered']
    #allocation6 [shape = 's32[1]{0}', space=sflag, size = 0x4, scoped, tag = 'scoped memory for tpu_custom_call.1']
    #allocation7 [shape = 'u8[4096]{0}', space=vmem, size = 0x1000, scoped, tag = 'input window, operand 3, single buffered']
    #allocation8 [shape = 'u8[4096]{0}', space=vmem, size = 0x1000, scoped, tag = 'output window, operand 0, single buffered']
    %14 = vsyncpa [#allocation3], 0
    %15 = vsyncpa [#allocation6], 0
    %16 = vsyncpa [#allocation4], 0
    // Predicated region
    $region2: #{tpu_custom_call.1} parent=1 // pred_check
      _
    $region3: #{tpu_custom_call.1} parent=1 // pred_check_branch
      %18 = sbr.rel (0) target = $region5
    $region4: #{tpu_custom_call.1} parent=1 // pred_region
      _
    $region5: #{tpu_custom_call.1} parent=1 // pred_fallthru
      _
    // Predicated region
    $region6: #{tpu_custom_call.1} parent=1 // pred_check
      _
    $region7: #{tpu_custom_call.1} parent=1 // pred_check_branch
      %20 = sbr.rel (0) target = $region9
    $region8: #{tpu_custom_call.1} parent=1 // pred_region
      %s22 = ssub.s32 128, 128
      %23 = vsyncadd [#allocation3], %s22
      %s25 = sshll.u32 [#allocation2], 4
      %s26 = int_to_ptr.vmem [resolvable:$true] %s25
      %28 = dma.hbm_to_vmem [thread:$0]  %s1, 128, %s26, [#allocation3]
    $region9: #{tpu_custom_call.1} parent=1 // pred_fallthru
      _
    // Predicated region
    $region10: #{tpu_custom_call.1} parent=1 // pred_check
      _
    $region11: #{tpu_custom_call.1} parent=1 // pred_check_branch
      %30 = sbr.rel (0) target = $region13
    $region12: #{tpu_custom_call.1} parent=1 // pred_region
      %s32 = ssub.s32 128, 128
      %33 = vsyncadd [#allocation6], %s32
      %s34 = sshll.u32 [#allocation5], 4
      %s35 = int_to_ptr.vmem [resolvable:$true] %s34
      %40 = dma.hbm_to_vmem [thread:$0]  %s2, 128, %s35, [#allocation6], 64, 64, 4
    $region13: #{tpu_custom_call.1} parent=1 // pred_fallthru
      _
    // Predicated region
    $region14: #{tpu_custom_call.1} parent=1 // pred_check
      _
    $region15: #{tpu_custom_call.1} parent=1 // pred_check_branch
      %42 = sbr.rel (0) target = $region17
    $region16: #{tpu_custom_call.1} parent=1 // pred_region
      %s44 = ssub.s32 128, 128
      %45 = vsyncadd [#allocation6], %s44
      %s46 = sshll.u32 [#allocation7], 4
      %s47 = int_to_ptr.vmem [resolvable:$true] %s46
      %52 = dma.hbm_to_vmem [thread:$0]  %s3, 128, %s47, [#allocation6], 64, 64, 4
    $region17: #{tpu_custom_call.1} parent=1 // pred_fallthru
      _
    // Predicated region
    $region18: #{tpu_custom_call.1} parent=1 // pred_check
      _
    $region19: #{tpu_custom_call.1} parent=1 // pred_check_branch
      %54 = sbr.rel (0) target = $region21
    $region20: #{tpu_custom_call.1} parent=1 // pred_region
      _
    $region21: #{tpu_custom_call.1} parent=1 // pred_fallthru
      _
    // Predicated region
    $region22: #{tpu_custom_call.1} parent=1 // pred_check
      _
    $region23: #{tpu_custom_call.1} parent=1 // pred_check_branch
      %56 = sbr.rel (0) target = $region25
    $region24: #{tpu_custom_call.1} parent=1 // pred_region
      _
    $region25: #{tpu_custom_call.1} parent=1 // pred_fallthru
      _
    // Predicated region
    $region26: #{tpu_custom_call.1} parent=1 // pred_check
      _
    $region27: #{tpu_custom_call.1} parent=1 // pred_check_branch
      %58 = sbr.rel (0) target = $region29
    $region28: #{tpu_custom_call.1} parent=1 // pred_region
      _
    $region29: #{tpu_custom_call.1} parent=1 // pred_fallthru
      _
    // Predicated region
    $region30: #{tpu_custom_call.1} parent=1 // pred_check
      _
    $region31: #{tpu_custom_call.1} parent=1 // pred_check_branch
      %60 = sbr.rel (0) target = $region33
    $region32: #{tpu_custom_call.1} parent=1 // pred_region
      _
    $region33: #{tpu_custom_call.1} parent=1 // pred_fallthru
      _
    // Predicated region
    $region34: #{tpu_custom_call.1} parent=1 // pred_check
      _
    $region35: #{tpu_custom_call.1} parent=1 // pred_check_branch
      %62 = sbr.rel (0) target = $region37
    $region36: #{tpu_custom_call.1} parent=1 // pred_region
      _
    $region37: #{tpu_custom_call.1} parent=1 // pred_fallthru
      _
    // Predicated region
    $region38: #{tpu_custom_call.1} parent=1 // pred_check
      _
    $region39: #{tpu_custom_call.1} parent=1 // pred_check_branch
      %64 = sbr.rel (0) target = $region41
    $region40: #{tpu_custom_call.1} parent=1 // pred_region
      %65 = dma.done [#allocation3], 128
    $region41: #{tpu_custom_call.1} parent=1 // pred_fallthru
      _
    // Predicated region
    $region42: #{tpu_custom_call.1} parent=1 // pred_check
      _
    $region43: #{tpu_custom_call.1} parent=1 // pred_check_branch
      %67 = sbr.rel (0) target = $region45
    $region44: #{tpu_custom_call.1} parent=1 // pred_region
      %68 = dma.done [#allocation6], 128
    $region45: #{tpu_custom_call.1} parent=1 // pred_fallthru
      _
    // Predicated region
    $region46: #{tpu_custom_call.1} parent=1 // pred_check
      _
    $region47: #{tpu_custom_call.1} parent=1 // pred_check_branch
      %70 = sbr.rel (0) target = $region49
    $region48: #{tpu_custom_call.1} parent=1 // pred_region
      %71 = dma.done [#allocation6], 128
    $region49: #{tpu_custom_call.1} parent=1 // pred_fallthru
      _
    %v73 = vld [vmem:[%s0] sm:$0xff]
    %vm74 = vcmask 80896
    %v75 = vsel %vm74, %v73, -inf
    %76 = vmax.xlane.f32.xlu0 %v75
    %v77 = vpop.xlane.xlu0 %76
    %v78 = vsub.f32 %v73, %v77
    %v79 = vmul.f32 %v78, 1.442695
    %v80 = vpow.pop %v79
    %v81 = vsel %vm74, %v80, 0.0
    %82 = vadd.xlane.f32.xlu0 %v81
    %v83 = vpop.xlane.xlu0 %82
    %v84 = vrcp.pop %v83
    %v85 = vmul.f32 %v80, %v84
    %v86 = vld [vmem:[#allocation2] sm:$0xff]
    %v87 = vpack.c.bf16 %v85, %v85
    %v88 = vld [vmem:[#allocation5] sm:$0xf]
    %v89 = vld [vmem:[#allocation5 + $0x4] sm:$0x1]
    %v90 = vpack.c.bf16 %v86, %v86
    %v91 = vld [vmem:[#allocation7] sm:$0xf]
    %v92 = vld [vmem:[#allocation7 + $0x4] sm:$0x1]
    %v95 = vunpack.c.l.b16 %v91
    %v96 = vunpack.c.l.b16 %v92
    %v97 = vpack.c.b16 %v96, %v95
    %v99 = vsel %vm74, %v90, 0
    %vm101 = vcmask 1044480
    %v103 = vsel %vm101, %v97, 0
    %105 = vmatprep.subr.bf16.mxu0 0
    %106 = vmatpush1.bf16.msra.mxu0 %v103
    %107 = vmatprep.subr.bf16.mxu0 0
    %108 = vmatpush1.bf16.msra.mxu0 0
    %109 = vmatprep.subr.bf16.mxu0 0
    %110 = vmatpush1.bf16.msra.mxu0 0
    %111 = vmatprep.subr.bf16.mxu0 0
    %112 = vmatpush1.bf16.msra.mxu0 0
    %113 = vmatprep.subr.bf16.mxu0 0
    %114 = vmatpush1.bf16.msra.mxu0 0
    %115 = vmatprep.subr.bf16.mxu0 0
    %116 = vmatpush1.bf16.msra.mxu0 0
    %117 = vmatprep.subr.bf16.mxu0 0
    %118 = vmatpush1.bf16.msra.mxu0 0
    %119 = vmatprep.subr.bf16.mxu0 0
    %120 = vmatpush1.bf16.msra.mxu0 0
    %121 = vmatprep.subr.bf16.mxu0 0
    %122 = vmatpush1.bf16.msra.mxu0 0
    %123 = vmatprep.subr.bf16.mxu0 0
    %124 = vmatpush1.bf16.msra.mxu0 0
    %125 = vmatprep.subr.bf16.mxu0 0
    %126 = vmatpush1.bf16.msra.mxu0 0
    %127 = vmatprep.subr.bf16.mxu0 0
    %128 = vmatpush1.bf16.msra.mxu0 0
    %129 = vmatprep.subr.bf16.mxu0 0
    %130 = vmatpush1.bf16.msra.mxu0 0
    %131 = vmatprep.subr.bf16.mxu0 0
    %132 = vmatpush1.bf16.msra.mxu0 0
    %133 = vmatprep.subr.bf16.mxu0 0
    %134 = vmatpush1.bf16.msra.mxu0 0
    %135 = vmatprep.subr.bf16.mxu0 0
    %136 = vmatpush1.bf16.msra.mxu0 0
    %137 = vmatprep.mubr.bf16.mxu0 0
    %138 = vmatmul.mubr.bf16.gmra.mrb[0].mxu0 %v99
    %v139 = vpop.f32.mrb[0].mxu0
    %v140 = vadd.f32 0.0, %v139
    %v141 = vpop.f32.mrb[0].mxu0
    %v142 = vpop.f32.mrb[0].mxu0
    %v143 = vpop.f32.mrb[0].mxu0
    %144 = vdwg.mxu0
    %v147 = vunpack.c.l.b16 %v88
    %v148 = vunpack.c.l.b16 %v89
    %v149 = vpack.c.b16 %v148, %v147
    %v151 = vsel %vm74, %v87, 0
    %v154 = vsel %vm101, %v149, 0
    %156 = vmatprep.subr.bf16.mxu0 0
    %157 = vmatpush1.bf16.msra.mxu0 %v154
    %158 = vmatprep.subr.bf16.mxu0 0
    %159 = vmatpush1.bf16.msra.mxu0 0
    %160 = vmatprep.subr.bf16.mxu0 0
    %161 = vmatpush1.bf16.msra.mxu0 0
    %162 = vmatprep.subr.bf16.mxu0 0
    %163 = vmatpush1.bf16.msra.mxu0 0
    %164 = vmatprep.subr.bf16.mxu0 0
    %165 = vmatpush1.bf16.msra.mxu0 0
    %166 = vmatprep.subr.bf16.mxu0 0
    %167 = vmatpush1.bf16.msra.mxu0 0
    %168 = vmatprep.subr.bf16.mxu0 0
    %169 = vmatpush1.bf16.msra.mxu0 0
    %170 = vmatprep.subr.bf16.mxu0 0
    %171 = vmatpush1.bf16.msra.mxu0 0
    %172 = vmatprep.subr.bf16.mxu0 0
    %173 = vmatpush1.bf16.msra.mxu0 0
    %174 = vmatprep.subr.bf16.mxu0 0
    %175 = vmatpush1.bf16.msra.mxu0 0
    %176 = vmatprep.subr.bf16.mxu0 0
    %177 = vmatpush1.bf16.msra.mxu0 0
    %178 = vmatprep.subr.bf16.mxu0 0
    %179 = vmatpush1.bf16.msra.mxu0 0
    %180 = vmatprep.subr.bf16.mxu0 0
    %181 = vmatpush1.bf16.msra.mxu0 0
    %182 = vmatprep.subr.bf16.mxu0 0
    %183 = vmatpush1.bf16.msra.mxu0 0
    %184 = vmatprep.subr.bf16.mxu0 0
    %185 = vmatpush1.bf16.msra.mxu0 0
    %186 = vmatprep.subr.bf16.mxu0 0
    %187 = vmatpush1.bf16.msra.mxu0 0
    %188 = vmatprep.mubr.bf16.mxu0 0
    %189 = vmatmul.mubr.bf16.gmra.mrb[0].mxu0 %v151
    %v190 = vpop.f32.mrb[0].mxu0
    %v191 = vadd.f32 %v140, %v190
    %v192 = vpop.f32.mrb[0].mxu0
    %v193 = vpop.f32.mrb[0].mxu0
    %v194 = vpop.f32.mrb[0].mxu0
    %195 = vdwg.mxu0
    %v196 = vld [vmem:[%s4] sm:$0x1]
    %v198 = vlaneseq
    %v199 = vshrl.u32 %v198, 7
    %v200 = vsub.s32 0, %v199
    %v201 = vrot.slane %v196, %v200
    %v203 = vadd.f32 %v191, %v201
    %v204 = vmax.f32 %v203, 0.0
    %v205 = vpack.c.bf16 %v204, %v204
    %v206 = vld [vmem:[%s5] sm:$0xf]
    %v207 = vld [vmem:[%s5 + $0x4] sm:$0xf]
    %v208 = vld [vmem:[%s5 + $0x8] sm:$0xf]
    %v209 = vld [vmem:[%s5 + $0xc] sm:$0xf]
    %v210 = vld [vmem:[%s6] sm:$0x1]
    %v212 = vlaneseq
    %v213 = vshrl.u32 %v212, 7
    %v214 = vsub.s32 0, %v213
    %v215 = vrot.slane %v210, %v214
    %v221 = vunpack.c.l.b16 %v206
    %v222 = vunpack.c.l.b16 %v207
    %v223 = vunpack.c.l.b16 %v208
    %v224 = vunpack.c.l.b16 %v209
    %v225 = vpack.c.b16 %v222, %v221
    %v226 = vpack.c.b16 %v224, %v223
    %vm229 = vcmask 261120
    %v231 = vsel %vm229, %v205, 0
    %233 = vmatprep.subr.bf16.mxu0 0
    %234 = vmatpush1.bf16.msra.mxu0 %v225
    %235 = vmatprep.subr.bf16.mxu0 0
    %236 = vmatpush1.bf16.msra.mxu0 %v226
    %237 = vmatprep.subr.bf16.mxu0 0
    %238 = vmatpush1.bf16.msra.mxu0 0
    %239 = vmatprep.subr.bf16.mxu0 0
    %240 = vmatpush1.bf16.msra.mxu0 0
    %241 = vmatprep.subr.bf16.mxu0 0
    %242 = vmatpush1.bf16.msra.mxu0 0
    %243 = vmatprep.subr.bf16.mxu0 0
    %244 = vmatpush1.bf16.msra.mxu0 0
    %245 = vmatprep.subr.bf16.mxu0 0
    %246 = vmatpush1.bf16.msra.mxu0 0
    %247 = vmatprep.subr.bf16.mxu0 0
    %248 = vmatpush1.bf16.msra.mxu0 0
    %249 = vmatprep.subr.bf16.mxu0 0
    %250 = vmatpush1.bf16.msra.mxu0 0
    %251 = vmatprep.subr.bf16.mxu0 0
    %252 = vmatpush1.bf16.msra.mxu0 0
    %253 = vmatprep.subr.bf16.mxu0 0
    %254 = vmatpush1.bf16.msra.mxu0 0
    %255 = vmatprep.subr.bf16.mxu0 0
    %256 = vmatpush1.bf16.msra.mxu0 0
    %257 = vmatprep.subr.bf16.mxu0 0
    %258 = vmatpush1.bf16.msra.mxu0 0
    %259 = vmatprep.subr.bf16.mxu0 0
    %260 = vmatpush1.bf16.msra.mxu0 0
    %261 = vmatprep.subr.bf16.mxu0 0
    %262 = vmatpush1.bf16.msra.mxu0 0
    %263 = vmatprep.subr.bf16.mxu0 0
    %264 = vmatpush1.bf16.msra.mxu0 0
    %265 = vmatprep.mubr.bf16.mxu0 0
    %266 = vmatmul.mubr.bf16.gmra.mrb[0].mxu0 %v231
    %v267 = vpop.f32.mrb[0].mxu0
    %v268 = vadd.f32 %v215, %v267
    %v269 = vpop.f32.mrb[0].mxu0
    %v270 = vpop.f32.mrb[0].mxu0
    %v271 = vpop.f32.mrb[0].mxu0
    %272 = vdwg.mxu0
    %v273 = vmax.f32 %v268, 0.0
    %v274 = vpack.c.bf16 %v273, %v273
    %v275 = vld [vmem:[%s7] sm:$0xf]
    %v276 = vld [vmem:[%s7 + $0x4] sm:$0xf]
    %v277 = vld [vmem:[%s7 + $0x8] sm:$0xf]
    %v278 = vld [vmem:[%s7 + $0xc] sm:$0xf]
    %v279 = vld [vmem:[%s8] sm:$0x1]
    %v281 = vlaneseq
    %v282 = vshrl.u32 %v281, 7
    %v283 = vsub.s32 0, %v282
    %v284 = vrot.slane %v279, %v283
    %v290 = vunpack.c.l.b16 %v275
    %v291 = vunpack.c.l.b16 %v276
    %v292 = vunpack.c.l.b16 %v277
    %v293 = vunpack.c.l.b16 %v278
    %v294 = vpack.c.b16 %v291, %v290
    %v295 = vpack.c.b16 %v293, %v292
    %v299 = vsel %vm229, %v274, 0
    %301 = vmatprep.subr.bf16.mxu0 0
    %302 = vmatpush1.bf16.msra.mxu0 %v294
    %303 = vmatprep.subr.bf16.mxu0 0
    %304 = vmatpush1.bf16.msra.mxu0 %v295
    %305 = vmatprep.subr.bf16.mxu0 0
    %306 = vmatpush1.bf16.msra.mxu0 0
    %307 = vmatprep.subr.bf16.mxu0 0
    %308 = vmatpush1.bf16.msra.mxu0 0
    %309 = vmatprep.subr.bf16.mxu0 0
    %310 = vmatpush1.bf16.msra.mxu0 0
    %311 = vmatprep.subr.bf16.mxu0 0
    %312 = vmatpush1.bf16.msra.mxu0 0
    %313 = vmatprep.subr.bf16.mxu0 0
    %314 = vmatpush1.bf16.msra.mxu0 0
    %315 = vmatprep.subr.bf16.mxu0 0
    %316 = vmatpush1.bf16.msra.mxu0 0
    %317 = vmatprep.subr.bf16.mxu0 0
    %318 = vmatpush1.bf16.msra.mxu0 0
    %319 = vmatprep.subr.bf16.mxu0 0
    %320 = vmatpush1.bf16.msra.mxu0 0
    %321 = vmatprep.subr.bf16.mxu0 0
    %322 = vmatpush1.bf16.msra.mxu0 0
    %323 = vmatprep.subr.bf16.mxu0 0
    %324 = vmatpush1.bf16.msra.mxu0 0
    %325 = vmatprep.subr.bf16.mxu0 0
    %326 = vmatpush1.bf16.msra.mxu0 0
    %327 = vmatprep.subr.bf16.mxu0 0
    %328 = vmatpush1.bf16.msra.mxu0 0
    %329 = vmatprep.subr.bf16.mxu0 0
    %330 = vmatpush1.bf16.msra.mxu0 0
    %331 = vmatprep.subr.bf16.mxu0 0
    %332 = vmatpush1.bf16.msra.mxu0 0
    %333 = vmatprep.mubr.bf16.mxu0 0
    %334 = vmatmul.mubr.bf16.gmra.mrb[0].mxu0 %v299
    %v335 = vpop.f32.mrb[0].mxu0
    %v336 = vadd.f32 %v284, %v335
    %v337 = vpop.f32.mrb[0].mxu0
    %v338 = vpop.f32.mrb[0].mxu0
    %v339 = vpop.f32.mrb[0].mxu0
    %340 = vdwg.mxu0
    %341 = vst.msk [vmem:[#allocation8] sm:$0xff] %vm74, %v336
    // Predicated region
    $region50: #{tpu_custom_call.1} parent=1 // pred_check
      _
    $region51: #{tpu_custom_call.1} parent=1 // pred_check_branch
      %343 = sbr.rel (0) target = $region53
    $region52: #{tpu_custom_call.1} parent=1 // pred_region
      %s345 = ssub.s32 128, 128
      %346 = vsyncadd [#allocation4], %s345
      %s348 = sshll.u32 [#allocation8], 4
      %s349 = int_to_ptr.vmem [resolvable:$true] %s348
      %351 = dma.vmem_to_hbm [thread:$0]  %s349, 128, %s9, [#allocation4]
    $region53: #{tpu_custom_call.1} parent=1 // pred_fallthru
      _
    // Predicated region
    $region54: #{tpu_custom_call.1} parent=1 // pred_check
      _
    $region55: #{tpu_custom_call.1} parent=1 // pred_check_branch
      %353 = sbr.rel (0) target = $region57
    $region56: #{tpu_custom_call.1} parent=1 // pred_region
      %354 = dma.done [#allocation4], 128
    $region57: #{tpu_custom_call.1} parent=1 // pred_fallthru
      _
    %355 = vsyncpa [#allocation3], 1
    %356 = vsyncpa [#allocation6], 1
    %357 = vsyncpa [#allocation4], 1

// kernel: tpu_custom_call.1
$region0: #{tpu_custom_call.1}
  #allocation0 [shape = 'u32[]', space=smem, size = 0x4, offset = 0x4, fixed_abs, tag = 'smem constant byte address 0x4 - core index']
  #allocation1 [shape = 'u32[144,128]{1,0:T(1,128)}', space=vmem, size = 0x12000, scoped, tag = 'internal scratch']
  %s0 = inlined_call_operand.vmem [shape: f32[8,10], index: 0, kind: input, shape index: {}]
  %s1 = inlined_call_operand.hbm [shape: f32[8,10], index: 1, kind: input, shape index: {}]
  %s2 = inlined_call_operand.hbm [shape: bf16[10,32], index: 2, kind: input, shape index: {}]
  %s3 = inlined_call_operand.hbm [shape: bf16[10,32], index: 3, kind: input, shape index: {}]
  %s4 = inlined_call_operand.vmem [shape: f32[1,32], index: 4, kind: input, shape index: {}]
  %s5 = inlined_call_operand.vmem [shape: bf16[32,32], index: 5, kind: input, shape index: {}]
  %s6 = inlined_call_operand.vmem [shape: f32[1,32], index: 6, kind: input, shape index: {}]
  %s7 = inlined_call_operand.vmem [shape: bf16[32,10], index: 7, kind: input, shape index: {}]
  %s8 = inlined_call_operand.vmem [shape: f32[1,10], index: 8, kind: input, shape index: {}]
  %s9 = inlined_call_operand.hbm [shape: f32[8,10], index: 9, kind: output, shape index: {}]
  %s10 = sld [smem:[#allocation0]]
  $region58: #{tpu_custom_call.1} parent=0
    _
  %s12 = ssub.s32 1, %s10
  %s13 = scalar_select 0, %s12, %s10
  $region1: #{tpu_custom_call.1} parent=0
    #allocation2 [shape = 'u8[4096]{0}', space=vmem, size = 0x1000, scoped, tag = 'input window, operand 1, single buffered']
    #allocation3 [shape = 's32[1]{0}', space=sflag, size = 0x4, scoped, tag = 'scoped memory for tpu_custom_call.1']
    #allocation4 [shape = 's32[1]{0}', space=sflag, size = 0x4, scoped, tag = 'scoped memory for tpu_custom_call.1']
    #allocation5 [shape = 'u8[4096]{0}', space=vmem, size = 0x1000, scoped, tag = 'input window, operand 2, single buffered']
    #allocation6 [shape = 's32[1]{0}', space=sflag, size = 0x4, scoped, tag = 'scoped memory for tpu_custom_call.1']
    #allocation7 [shape = 'u8[4096]{0}', space=vmem, size = 0x1000, scoped, tag = 'input window, operand 3, single buffered']
    #allocation8 [shape = 'u8[4096]{0}', space=vmem, size = 0x1000, scoped, tag = 'output window, operand 0, single buffered']
    %14 = vsyncpa [#allocation3], 0
    %15 = vsyncpa [#allocation6], 0
    %16 = vsyncpa [#allocation4], 0
    // Predicated region
    $region2: #{tpu_custom_call.1} parent=1 // pred_check
      _
    $region3: #{tpu_custom_call.1} parent=1 // pred_check_branch
      %18 = sbr.rel (0) target = $region5
    $region4: #{tpu_custom_call.1} parent=1 // pred_region
      _
    $region5: #{tpu_custom_call.1} parent=1 // pred_fallthru
      _
    // Predicated region
    $region6: #{tpu_custom_call.1} parent=1 // pred_check
      _
    $region7: #{tpu_custom_call.1} parent=1 // pred_check_branch
      %20 = sbr.rel (0) target = $region9
    $region8: #{tpu_custom_call.1} parent=1 // pred_region
      %s22 = ssub.s32 128, 128
      %23 = vsyncadd [#allocation3], %s22
      %s25 = sshll.u32 [#allocation2], 4
      %s26 = int_to_ptr.vmem [resolvable:$true] %s25
      %28 = dma.hbm_to_vmem [thread:$0]  %s1, 128, %s26, [#allocation3]
    $region9: #{tpu_custom_call.1} parent=1 // pred_fallthru
      _
    // Predicated region
    $region10: #{tpu_custom_call.1} parent=1 // pred_check
      _
    $region11: #{tpu_custom_call.1} parent=1 // pred_check_branch
      %30 = sbr.rel (0) target = $region13
    $region12: #{tpu_custom_call.1} parent=1 // pred_region
      %s32 = ssub.s32 128, 128
      %33 = vsyncadd [#allocation6], %s32
      %s34 = sshll.u32 [#allocation5], 4
      %s35 = int_to_ptr.vmem [resolvable:$true] %s34
      %40 = dma.hbm_to_vmem [thread:$0]  %s2, 128, %s35, [#allocation6], 64, 64, 4
    $region13: #{tpu_custom_call.1} parent=1 // pred_fallthru
      _
    // Predicated region
    $region14: #{tpu_custom_call.1} parent=1 // pred_check
      _
    $region15: #{tpu_custom_call.1} parent=1 // pred_check_branch
      %42 = sbr.rel (0) target = $region17
    $region16: #{tpu_custom_call.1} parent=1 // pred_region
      %s44 = ssub.s32 128, 128
      %45 = vsyncadd [#allocation6], %s44
      %s46 = sshll.u32 [#allocation7], 4
      %s47 = int_to_ptr.vmem [resolvable:$true] %s46
      %52 = dma.hbm_to_vmem [thread:$0]  %s3, 128, %s47, [#allocation6], 64, 64, 4
    $region17: #{tpu_custom_call.1} parent=1 // pred_fallthru
      _
    // Predicated region
    $region18: #{tpu_custom_call.1} parent=1 // pred_check
      _
    $region19: #{tpu_custom_call.1} parent=1 // pred_check_branch
      %54 = sbr.rel (0) target = $region21
    $region20: #{tpu_custom_call.1} parent=1 // pred_region
      _
    $region21: #{tpu_custom_call.1} parent=1 // pred_fallthru
      _
    // Predicated region
    $region22: #{tpu_custom_call.1} parent=1 // pred_check
      _
    $region23: #{tpu_custom_call.1} parent=1 // pred_check_branch
      %56 = sbr.rel (0) target = $region25
    $region24: #{tpu_custom_call.1} parent=1 // pred_region
      _
    $region25: #{tpu_custom_call.1} parent=1 // pred_fallthru
      _
    // Predicated region
    $region26: #{tpu_custom_call.1} parent=1 // pred_check
      _
    $region27: #{tpu_custom_call.1} parent=1 // pred_check_branch
      %58 = sbr.rel (0) target = $region29
    $region28: #{tpu_custom_call.1} parent=1 // pred_region
      _
    $region29: #{tpu_custom_call.1} parent=1 // pred_fallthru
      _
    // Predicated region
    $region30: #{tpu_custom_call.1} parent=1 // pred_check
      _
    $region31: #{tpu_custom_call.1} parent=1 // pred_check_branch
      %60 = sbr.rel (0) target = $region33
    $region32: #{tpu_custom_call.1} parent=1 // pred_region
      _
    $region33: #{tpu_custom_call.1} parent=1 // pred_fallthru
      _
    // Predicated region
    $region34: #{tpu_custom_call.1} parent=1 // pred_check
      _
    $region35: #{tpu_custom_call.1} parent=1 // pred_check_branch
      %62 = sbr.rel (0) target = $region37
    $region36: #{tpu_custom_call.1} parent=1 // pred_region
      _
    $region37: #{tpu_custom_call.1} parent=1 // pred_fallthru
      _
    // Predicated region
    $region38: #{tpu_custom_call.1} parent=1 // pred_check
      _
    $region39: #{tpu_custom_call.1} parent=1 // pred_check_branch
      %64 = sbr.rel (0) target = $region41
    $region40: #{tpu_custom_call.1} parent=1 // pred_region
      %65 = dma.done [#allocation3], 128
    $region41: #{tpu_custom_call.1} parent=1 // pred_fallthru
      _
    // Predicated region
    $region42: #{tpu_custom_call.1} parent=1 // pred_check
      _
    $region43: #{tpu_custom_call.1} parent=1 // pred_check_branch
      %67 = sbr.rel (0) target = $region45
    $region44: #{tpu_custom_call.1} parent=1 // pred_region
      %68 = dma.done [#allocation6], 128
    $region45: #{tpu_custom_call.1} parent=1 // pred_fallthru
      _
    // Predicated region
    $region46: #{tpu_custom_call.1} parent=1 // pred_check
      _
    $region47: #{tpu_custom_call.1} parent=1 // pred_check_branch
      %70 = sbr.rel (0) target = $region49
    $region48: #{tpu_custom_call.1} parent=1 // pred_region
      %71 = dma.done [#allocation6], 128
    $region49: #{tpu_custom_call.1} parent=1 // pred_fallthru
      _
    %v73 = vld [vmem:[%s0] sm:$0xff]
    %vm74 = vcmask 80896
    %v75 = vsel %vm74, %v73, -inf
    %76 = vmax.xlane.f32.xlu0 %v75
    %v77 = vpop.xlane.xlu0 %76
    %v78 = vsub.f32 %v73, %v77
    %v79 = vmul.f32 %v78, 1.442695
    %v80 = vpow.pop %v79
    %v81 = vsel %vm74, %v80, 0.0
    %82 = vadd.xlane.f32.xlu0 %v81
    %v83 = vpop.xlane.xlu0 %82
    %v84 = vrcp.pop %v83
    %v85 = vmul.f32 %v80, %v84
    %v86 = vld [vmem:[#allocation2] sm:$0xff]
    %v87 = vpack.c.bf16 %v85, %v85
    %v88 = vld [vmem:[#allocation5] sm:$0xf]
    %v89 = vld [vmem:[#allocation5 + $0x4] sm:$0x1]
    %v90 = vpack.c.bf16 %v86, %v86
    %v91 = vld [vmem:[#allocation7] sm:$0xf]
    %v92 = vld [vmem:[#allocation7 + $0x4] sm:$0x1]
    %v95 = vunpack.c.l.b16 %v91
    %v96 = vunpack.c.l.b16 %v92
    %v97 = vpack.c.b16 %v96, %v95
    %v99 = vsel %vm74, %v90, 0
    %vm101 = vcmask 1044480
    %v103 = vsel %vm101, %v97, 0
    %105 = vmatprep.subr.bf16.mxu0 0
    %106 = vmatpush1.bf16.msra.mxu0 %v103
    %107 = vmatprep.subr.bf16.mxu0 0
    %108 = vmatpush1.bf16.msra.mxu0 0
    %109 = vmatprep.subr.bf16.mxu0 0
    %110 = vmatpush1.bf16.msra.mxu0 0
    %111 = vmatprep.subr.bf16.mxu0 0
    %112 = vmatpush1.bf16.msra.mxu0 0
    %113 = vmatprep.subr.bf16.mxu0 0
    %114 = vmatpush1.bf16.msra.mxu0 0
    %115 = vmatprep.subr.bf16.mxu0 0
    %116 = vmatpush1.bf16.msra.mxu0 0
    %117 = vmatprep.subr.bf16.mxu0 0
    %118 = vmatpush1.bf16.msra.mxu0 0
    %119 = vmatprep.subr.bf16.mxu0 0
    %120 = vmatpush1.bf16.msra.mxu0 0
    %121 = vmatprep.subr.bf16.mxu0 0
    %122 = vmatpush1.bf16.msra.mxu0 0
    %123 = vmatprep.subr.bf16.mxu0 0
    %124 = vmatpush1.bf16.msra.mxu0 0
    %125 = vmatprep.subr.bf16.mxu0 0
    %126 = vmatpush1.bf16.msra.mxu0 0
    %127 = vmatprep.subr.bf16.mxu0 0
    %128 = vmatpush1.bf16.msra.mxu0 0
    %129 = vmatprep.subr.bf16.mxu0 0
    %130 = vmatpush1.bf16.msra.mxu0 0
    %131 = vmatprep.subr.bf16.mxu0 0
    %132 = vmatpush1.bf16.msra.mxu0 0
    %133 = vmatprep.subr.bf16.mxu0 0
    %134 = vmatpush1.bf16.msra.mxu0 0
    %135 = vmatprep.subr.bf16.mxu0 0
    %136 = vmatpush1.bf16.msra.mxu0 0
    %137 = vmatprep.mubr.bf16.mxu0 0
    %138 = vmatmul.mubr.bf16.gmra.mrb[0].mxu0 %v99
    %v139 = vpop.f32.mrb[0].mxu0
    %v140 = vadd.f32 0.0, %v139
    %v141 = vpop.f32.mrb[0].mxu0
    %v142 = vpop.f32.mrb[0].mxu0
    %v143 = vpop.f32.mrb[0].mxu0
    %144 = vdwg.mxu0
    %v147 = vunpack.c.l.b16 %v88
    %v148 = vunpack.c.l.b16 %v89
    %v149 = vpack.c.b16 %v148, %v147
    %v151 = vsel %vm74, %v87, 0
    %v154 = vsel %vm101, %v149, 0
    %156 = vmatprep.subr.bf16.mxu0 0
    %157 = vmatpush1.bf16.msra.mxu0 %v154
    %158 = vmatprep.subr.bf16.mxu0 0
    %159 = vmatpush1.bf16.msra.mxu0 0
    %160 = vmatprep.subr.bf16.mxu0 0
    %161 = vmatpush1.bf16.msra.mxu0 0
    %162 = vmatprep.subr.bf16.mxu0 0
    %163 = vmatpush1.bf16.msra.mxu0 0
    %164 = vmatprep.subr.bf16.mxu0 0
    %165 = vmatpush1.bf16.msra.mxu0 0
    %166 = vmatprep.subr.bf16.mxu0 0
    %167 = vmatpush1.bf16.msra.mxu0 0
    %168 = vmatprep.subr.bf16.mxu0 0
    %169 = vmatpush1.bf16.msra.mxu0 0
    %170 = vmatprep.subr.bf16.mxu0 0
    %171 = vmatpush1.bf16.msra.mxu0 0
    %172 = vmatprep.subr.bf16.mxu0 0
    %173 = vmatpush1.bf16.msra.mxu0 0
    %174 = vmatprep.subr.bf16.mxu0 0
    %175 = vmatpush1.bf16.msra.mxu0 0
    %176 = vmatprep.subr.bf16.mxu0 0
    %177 = vmatpush1.bf16.msra.mxu0 0
    %178 = vmatprep.subr.bf16.mxu0 0
    %179 = vmatpush1.bf16.msra.mxu0 0
    %180 = vmatprep.subr.bf16.mxu0 0
    %181 = vmatpush1.bf16.msra.mxu0 0
    %182 = vmatprep.subr.bf16.mxu0 0
    %183 = vmatpush1.bf16.msra.mxu0 0
    %184 = vmatprep.subr.bf16.mxu0 0
    %185 = vmatpush1.bf16.msra.mxu0 0
    %186 = vmatprep.subr.bf16.mxu0 0
    %187 = vmatpush1.bf16.msra.mxu0 0
    %188 = vmatprep.mubr.bf16.mxu0 0
    %189 = vmatmul.mubr.bf16.gmra.mrb[0].mxu0 %v151
    %v190 = vpop.f32.mrb[0].mxu0
    %v191 = vadd.f32 %v140, %v190
    %v192 = vpop.f32.mrb[0].mxu0
    %v193 = vpop.f32.mrb[0].mxu0
    %v194 = vpop.f32.mrb[0].mxu0
    %195 = vdwg.mxu0
    %v196 = vld [vmem:[%s4] sm:$0x1]
    %v198 = vlaneseq
    %v199 = vshrl.u32 %v198, 7
    %v200 = vsub.s32 0, %v199
    %v201 = vrot.slane %v196, %v200
    %v203 = vadd.f32 %v191, %v201
    %v204 = vmax.f32 %v203, 0.0
    %v205 = vpack.c.bf16 %v204, %v204
    %v206 = vld [vmem:[%s5] sm:$0xf]
    %v207 = vld [vmem:[%s5 + $0x4] sm:$0xf]
    %v208 = vld [vmem:[%s5 + $0x8] sm:$0xf]
    %v209 = vld [vmem:[%s5 + $0xc] sm:$0xf]
    %v210 = vld [vmem:[%s6] sm:$0x1]
    %v212 = vlaneseq
    %v213 = vshrl.u32 %v212, 7
    %v214 = vsub.s32 0, %v213
    %v215 = vrot.slane %v210, %v214
    %v221 = vunpack.c.l.b16 %v206
    %v222 = vunpack.c.l.b16 %v207
    %v223 = vunpack.c.l.b16 %v208
    %v224 = vunpack.c.l.b16 %v209
    %v225 = vpack.c.b16 %v222, %v221
    %v226 = vpack.c.b16 %v224, %v223
    %vm229 = vcmask 261120
    %v231 = vsel %vm229, %v205, 0
    %233 = vmatprep.subr.bf16.mxu0 0
    %234 = vmatpush1.bf16.msra.mxu0 %v225
    %235 = vmatprep.subr.bf16.mxu0 0
    %236 = vmatpush1.bf16.msra.mxu0 %v226
    %237 = vmatprep.subr.bf16.mxu0 0
    %238 = vmatpush1.bf16.msra.mxu0 0
    %239 = vmatprep.subr.bf16.mxu0 0
    %240 = vmatpush1.bf16.msra.mxu0 0
    %241 = vmatprep.subr.bf16.mxu0 0
    %242 = vmatpush1.bf16.msra.mxu0 0
    %243 = vmatprep.subr.bf16.mxu0 0
    %244 = vmatpush1.bf16.msra.mxu0 0
    %245 = vmatprep.subr.bf16.mxu0 0
    %246 = vmatpush1.bf16.msra.mxu0 0
    %247 = vmatprep.subr.bf16.mxu0 0
    %248 = vmatpush1.bf16.msra.mxu0 0
    %249 = vmatprep.subr.bf16.mxu0 0
    %250 = vmatpush1.bf16.msra.mxu0 0
    %251 = vmatprep.subr.bf16.mxu0 0
    %252 = vmatpush1.bf16.msra.mxu0 0
    %253 = vmatprep.subr.bf16.mxu0 0
    %254 = vmatpush1.bf16.msra.mxu0 0
    %255 = vmatprep.subr.bf16.mxu0 0
    %256 = vmatpush1.bf16.msra.mxu0 0
    %257 = vmatprep.subr.bf16.mxu0 0
    %258 = vmatpush1.bf16.msra.mxu0 0
    %259 = vmatprep.subr.bf16.mxu0 0
    %260 = vmatpush1.bf16.msra.mxu0 0
    %261 = vmatprep.subr.bf16.mxu0 0
    %262 = vmatpush1.bf16.msra.mxu0 0
    %263 = vmatprep.subr.bf16.mxu0 0
    %264 = vmatpush1.bf16.msra.mxu0 0
    %265 = vmatprep.mubr.bf16.mxu0 0
    %266 = vmatmul.mubr.bf16.gmra.mrb[0].mxu0 %v231
    %v267 = vpop.f32.mrb[0].mxu0
    %v268 = vadd.f32 %v215, %v267
    %v269 = vpop.f32.mrb[0].mxu0
    %v270 = vpop.f32.mrb[0].mxu0
    %v271 = vpop.f32.mrb[0].mxu0
    %272 = vdwg.mxu0
    %v273 = vmax.f32 %v268, 0.0
    %v274 = vpack.c.bf16 %v273, %v273
    %v275 = vld [vmem:[%s7] sm:$0xf]
    %v276 = vld [vmem:[%s7 + $0x4] sm:$0xf]
    %v277 = vld [vmem:[%s7 + $0x8] sm:$0xf]
    %v278 = vld [vmem:[%s7 + $0xc] sm:$0xf]
    %v279 = vld [vmem:[%s8] sm:$0x1]
    %v281 = vlaneseq
    %v282 = vshrl.u32 %v281, 7
    %v283 = vsub.s32 0, %v282
    %v284 = vrot.slane %v279, %v283
    %v290 = vunpack.c.l.b16 %v275
    %v291 = vunpack.c.l.b16 %v276
    %v292 = vunpack.c.l.b16 %v277
    %v293 = vunpack.c.l.b16 %v278
    %v294 = vpack.c.b16 %v291, %v290
    %v295 = vpack.c.b16 %v293, %v292
    %v299 = vsel %vm229, %v274, 0
    %301 = vmatprep.subr.bf16.mxu0 0
    %302 = vmatpush1.bf16.msra.mxu0 %v294
    %303 = vmatprep.subr.bf16.mxu0 0
    %304 = vmatpush1.bf16.msra.mxu0 %v295
    %305 = vmatprep.subr.bf16.mxu0 0
    %306 = vmatpush1.bf16.msra.mxu0 0
    %307 = vmatprep.subr.bf16.mxu0 0
    %308 = vmatpush1.bf16.msra.mxu0 0
    %309 = vmatprep.subr.bf16.mxu0 0
    %310 = vmatpush1.bf16.msra.mxu0 0
    %311 = vmatprep.subr.bf16.mxu0 0
    %312 = vmatpush1.bf16.msra.mxu0 0
    %313 = vmatprep.subr.bf16.mxu0 0
    %314 = vmatpush1.bf16.msra.mxu0 0
    %315 = vmatprep.subr.bf16.mxu0 0
    %316 = vmatpush1.bf16.msra.mxu0 0
    %317 = vmatprep.subr.bf16.mxu0 0
    %318 = vmatpush1.bf16.msra.mxu0 0
    %319 = vmatprep.subr.bf16.mxu0 0
    %320 = vmatpush1.bf16.msra.mxu0 0
    %321 = vmatprep.subr.bf16.mxu0 0
    %322 = vmatpush1.bf16.msra.mxu0 0
    %323 = vmatprep.subr.bf16.mxu0 0
    %324 = vmatpush1.bf16.msra.mxu0 0
    %325 = vmatprep.subr.bf16.mxu0 0
    %326 = vmatpush1.bf16.msra.mxu0 0
    %327 = vmatprep.subr.bf16.mxu0 0
    %328 = vmatpush1.bf16.msra.mxu0 0
    %329 = vmatprep.subr.bf16.mxu0 0
    %330 = vmatpush1.bf16.msra.mxu0 0
    %331 = vmatprep.subr.bf16.mxu0 0
    %332 = vmatpush1.bf16.msra.mxu0 0
    %333 = vmatprep.mubr.bf16.mxu0 0
    %334 = vmatmul.mubr.bf16.gmra.mrb[0].mxu0 %v299
    %v335 = vpop.f32.mrb[0].mxu0
    %v336 = vadd.f32 %v284, %v335
    %v337 = vpop.f32.mrb[0].mxu0
    %v338 = vpop.f32.mrb[0].mxu0
    %v339 = vpop.f32.mrb[0].mxu0
    %340 = vdwg.mxu0
    %341 = vst.msk [vmem:[#allocation8] sm:$0xff] %vm74, %v336
    // Predicated region
    $region50: #{tpu_custom_call.1} parent=1 // pred_check
      _
    $region51: #{tpu_custom_call.1} parent=1 // pred_check_branch
      %343 = sbr.rel (0) target = $region53
    $region52: #{tpu_custom_call.1} parent=1 // pred_region
      %s345 = ssub.s32 128, 128
      %346 = vsyncadd [#allocation4], %s345
      %s348 = sshll.u32 [#allocation8], 4
      %s349 = int_to_ptr.vmem [resolvable:$true] %s348
      %351 = dma.vmem_to_hbm [thread:$0]  %s349, 128, %s9, [#allocation4]
    $region53: #{tpu_custom_call.1} parent=1 // pred_fallthru
      _
    // Predicated region
    $region54: #{tpu_custom_call.1} parent=1 // pred_check
      _
    $region55: #{tpu_custom_call.1} parent=1 // pred_check_branch
      %353 = sbr.rel (0) target = $region57
    $region56: #{tpu_custom_call.1} parent=1 // pred_region
      %354 = dma.done [#allocation4], 128
    $region57: #{tpu_custom_call.1} parent=1 // pred_fallthru
      _
    %355 = vsyncpa [#allocation3], 1
    %356 = vsyncpa [#allocation6], 1
    %357 = vsyncpa [#allocation4], 1

</llo_original>
